<compile_context>
chip_gen: v5e
topology: v5e:2x2
jax: 0.10.0
libtpu: 0.0.40
codegen_flags: <defaults>
</compile_context>

<pallas_src>
import functools

import jax
import jax.numpy as jnp
from jax.experimental import pallas as pl
from jax.experimental.pallas import tpu as pltpu


# ----------------------------------------------------------------------------
# Fused Pallas kernel: GCN stack + MLP readout, activation resident in VMEM
# ----------------------------------------------------------------------------
def _fused_gcn_kernel(num_gcn, num_fc, adj_ref, x0_ref, gw_ref, gb_ref,
                      mw_ref, mb_ref, o_ref):
    """Whole forward pass on one VMEM-resident activation.

    adj_ref: [Np, Np]    bf16  normalized adjacency (zero padded)
    x0_ref : [Np, Hp]    f32   AtomEncoder output   (zero padded)
    gw_ref : [L, Hp, Hp] f32   GCNConv weights (pre-transposed, zero padded)
    gb_ref : [L, 1, Hp]  f32   GCNConv biases  (zero padded)
    mw_ref : [M, Hp, Hp] f32   MLPReadout weights (zero padded)
    mb_ref : [M, 1, Hp]  f32   MLPReadout biases  (zero padded)
    o_ref  : [Np, Hp]    f32   padded output (real data in [:N, :out_dim])
    """
    bf16 = jnp.bfloat16
    f32 = jnp.float32

    adj = adj_ref[...]                                   # bf16 [Np, Np]
    x = x0_ref[...]                                      # f32  [Np, Hp]

    # --- GCNConv stack: x <- A_hat @ (x @ W_l) + b_l, ReLU except last ------
    for l in range(num_gcn):
        xw = jnp.dot(x.astype(bf16), gw_ref[l].astype(bf16),
                     preferred_element_type=f32)
        y = jnp.dot(adj, xw.astype(bf16), preferred_element_type=f32)
        y = y + gb_ref[l]                                # f32 bias add
        if l != num_gcn - 1:
            y = jnp.maximum(y, 0.0)                      # ReLU in f32
        x = y

    # --- MLP readout: ReLU after all but the last FC layer -------------------
    for i in range(num_fc):
        x = jnp.dot(x, mw_ref[i], preferred_element_type=f32) + mb_ref[i]
        if i != num_fc - 1:
            x = jnp.maximum(x, 0.0)

    o_ref[...] = x.astype(o_ref.dtype)


# ----------------------------------------------------------------------------
# Glue: padding helpers, parameters, normalized adjacency, forward wrappers
# ----------------------------------------------------------------------------
def _round_up(x, m):
    return (x + m - 1) // m * m


def _full_spec(shape):
    nd = len(shape)
    return pl.BlockSpec(shape, lambda i, _nd=nd: (0,) * _nd)


def _pad_to(a, shape):
    return jnp.pad(a, [(0, t - s) for s, t in zip(a.shape, shape)])


def make_params(key, hidden, out_channels, num_layers, vocab_sizes):
    n_keys = len(vocab_sizes) + 2 * num_layers + 6
    keys = iter(jax.random.split(key, n_keys))
    params = {}
    # AtomEncoder: one embedding table per categorical feature, summed.
    params["atom_emb"] = [
        0.1 * jax.random.normal(next(keys), (v, hidden), jnp.float32)
        for v in vocab_sizes]
    # GCNConv layers: PyG applies X @ W.T; store W already transposed [H, H].
    params["gcn_w"] = [
        0.1 * jax.random.normal(next(keys), (hidden, hidden), jnp.float32)
        for _ in range(num_layers)]
    params["gcn_b"] = [
        0.01 * jax.random.normal(next(keys), (1, hidden), jnp.float32)
        for _ in range(num_layers)]
    # MLPReadout (L=2): H -> H//2 -> H//4 -> out
    dims = [hidden, hidden // 2, hidden // 4, out_channels]
    params["mlp_w"], params["mlp_b"] = [], []
    for d_in, d_out in zip(dims[:-1], dims[1:]):
        params["mlp_w"].append(
            0.1 * jax.random.normal(next(keys), (d_in, d_out), jnp.float32))
        params["mlp_b"].append(
            0.01 * jax.random.normal(next(keys), (1, d_out), jnp.float32))
    return params


def normalized_adjacency(edge_index, num_nodes):
    """Dense A_hat matching PyG GCNConv's gcn_norm (add_self_loops=True):
    duplicate edges accumulate, self-loop weight is fixed at 1, no
    symmetrization; A_hat[d, s] = deg[d]^-1/2 * w(s->d) * deg[s]^-1/2 with
    deg = in-degree (incl. self loop)."""
    src, dst = edge_index
    w = jnp.where(src != dst, 1.0, 0.0).astype(jnp.float32)
    adj = jnp.zeros((num_nodes, num_nodes), jnp.float32).at[src, dst].add(w)
    adj = adj + jnp.eye(num_nodes, dtype=jnp.float32)    # self loops, weight 1
    msg = adj.T                                          # msg[d, s] = w(s->d)
    deg = msg.sum(axis=1)
    dinv = jnp.where(deg > 0, 1.0 / jnp.sqrt(deg), 0.0)
    return msg * dinv[:, None] * dinv[None, :]


def gcn_forward(params, node_feats, edge_index, num_layers, out_channels):
    n = node_feats.shape[0]
    hidden = params["gcn_w"][0].shape[0]
    n_pad = _round_up(max(n, 8), 128)          # lane-dense adjacency / rows
    h_pad = _round_up(hidden, 128)             # covers H, H/2, H/4, out too

    # Normalized adjacency, bf16: halves HBM/VMEM for the dominant N^2 operand.
    a_hat = _pad_to(normalized_adjacency(edge_index, n),
                    (n_pad, n_pad)).astype(jnp.bfloat16)

    # AtomEncoder: sum of per-feature embedding gathers (no one-hot matmul).
    x0 = jnp.zeros((n, hidden), jnp.float32)
    for f, table in enumerate(params["atom_emb"]):
        x0 = x0 + jnp.take(table, node_feats[:, f], axis=0)
    x0 = _pad_to(x0, (n_pad, h_pad))

    # Stack + zero-pad layer weights so the kernel can index them by layer.
    gw = jnp.stack([_pad_to(w, (h_pad, h_pad)) for w in params["gcn_w"]])
    gb = jnp.stack([_pad_to(b, (1, h_pad)) for b in params["gcn_b"]])
    mw = jnp.stack([_pad_to(w, (h_pad, h_pad)) for w in params["mlp_w"]])
    mb = jnp.stack([_pad_to(b, (1, h_pad)) for b in params["mlp_b"]])
    num_fc = len(params["mlp_w"])

    out_pad = pl.pallas_call(
        functools.partial(_fused_gcn_kernel, num_layers, num_fc),
        out_shape=jax.ShapeDtypeStruct((n_pad, h_pad), jnp.float32),
        grid=(1,),
        in_specs=[_full_spec(a_hat.shape), _full_spec(x0.shape),
                  _full_spec(gw.shape), _full_spec(gb.shape),
                  _full_spec(mw.shape), _full_spec(mb.shape)],
        out_specs=_full_spec((n_pad, h_pad)),
        compiler_params=pltpu.CompilerParams(
            dimension_semantics=("arbitrary",)),
    )(a_hat, x0, gw, gb, mw, mb)

    return out_pad[:n, :out_channels]


def gcn_forward_ref(params, node_feats, edge_index, num_layers):
    """Pure-JAX f32 reference for correctness checking."""
    n = node_feats.shape[0]
    hidden = params["gcn_w"][0].shape[0]
    a_hat = normalized_adjacency(edge_index, n)
    x = jnp.zeros((n, hidden), jnp.float32)
    for f, table in enumerate(params["atom_emb"]):
        x = x + table[node_feats[:, f]]
    for l in range(num_layers):
        x = a_hat @ (x @ params["gcn_w"][l]) + params["gcn_b"][l]
        if l != num_layers - 1:
            x = jnp.maximum(x, 0.0)
    num_fc = len(params["mlp_w"])
    for i in range(num_fc):
        x = x @ params["mlp_w"][i] + params["mlp_b"][i]
        if i != num_fc - 1:
            x = jnp.maximum(x, 0.0)
    return x


# ----------------------------------------------------------------------------
if __name__ == "__main__":
    HIDDEN = 32
    OUT = 4
    NUM_LAYERS = 3
    N_NODES = 16
    N_EDGES = 32
    VOCAB_SIZES = (5, 7)   # two categorical atom-feature columns

    key = jax.random.PRNGKey(0)
    k_param, k_feat, k_edge = jax.random.split(key, 3)

    params = make_params(k_param, HIDDEN, OUT, NUM_LAYERS, VOCAB_SIZES)

    node_feats = jnp.stack(
        [jax.random.randint(jax.random.fold_in(k_feat, f), (N_NODES,), 0, v)
         for f, v in enumerate(VOCAB_SIZES)], axis=1).astype(jnp.int32)
    edge_index = jax.random.randint(k_edge, (2, N_EDGES), 0, N_NODES,
                                    dtype=jnp.int32)

    out = gcn_forward(params, node_feats, edge_index, NUM_LAYERS, OUT)
    out = jax.block_until_ready(out)

    ref = gcn_forward_ref(params, node_feats, edge_index, NUM_LAYERS)
    assert out.shape == (N_NODES, OUT), out.shape
    # bf16 MXU inputs (A_hat, x, W) with f32 accumulation -> loosened tolerance.
    assert jnp.allclose(out, ref, atol=1e-3, rtol=1e-2), (
        float(jnp.max(jnp.abs(out - ref))))

    print("KERNEL_OK")
</pallas_src>

<mosaic_0001>
module attributes {stable_mosaic.version = 11 : i64} {
  func.func @_fused_gcn_kernel(%arg0: i32, %arg1: memref<128x128xbf16, #tpu.memory_space<vmem>>, %arg2: memref<128x128xf32, #tpu.memory_space<vmem>>, %arg3: memref<3x128x128xf32, #tpu.memory_space<vmem>>, %arg4: memref<3x1x128xf32, #tpu.memory_space<vmem>>, %arg5: memref<3x128x128xf32, #tpu.memory_space<vmem>>, %arg6: memref<3x1x128xf32, #tpu.memory_space<vmem>>, %arg7: memref<128x128xf32, #tpu.memory_space<vmem>>) attributes {dimension_semantics = [#tpu.dimension_semantics<arbitrary>], iteration_bounds = array<i64: 1>, scalar_prefetch = 0 : i64, scratch_operands = 0 : i64, tpu.core_type = #tpu.core_type<tc>, window_params = [{pipeline_mode = #tpu.pipeline_mode<synchronous>, transform_indices = @transform_0, window_bounds = array<i64: 128, 128>}, {pipeline_mode = #tpu.pipeline_mode<synchronous>, transform_indices = @transform_1, window_bounds = array<i64: 128, 128>}, {pipeline_mode = #tpu.pipeline_mode<synchronous>, transform_indices = @transform_2, window_bounds = array<i64: 3, 128, 128>}, {pipeline_mode = #tpu.pipeline_mode<synchronous>, transform_indices = @transform_3, window_bounds = array<i64: 3, 1, 128>}, {pipeline_mode = #tpu.pipeline_mode<synchronous>, transform_indices = @transform_4, window_bounds = array<i64: 3, 128, 128>}, {pipeline_mode = #tpu.pipeline_mode<synchronous>, transform_indices = @transform_5, window_bounds = array<i64: 3, 1, 128>}, {pipeline_mode = #tpu.pipeline_mode<synchronous>, transform_indices = @transform_6, window_bounds = array<i64: 128, 128>}]} {
    %c0 = arith.constant 0 : index
    %c0_0 = arith.constant 0 : index
    %0 = vector.load %arg1[%c0, %c0_0] : memref<128x128xbf16, #tpu.memory_space<vmem>>, vector<128x128xbf16>
    %c0_1 = arith.constant 0 : index
    %c0_2 = arith.constant 0 : index
    %1 = vector.load %arg2[%c0_1, %c0_2] : memref<128x128xf32, #tpu.memory_space<vmem>>, vector<128x128xf32>
    %2 = arith.truncf %1 : vector<128x128xf32> to vector<128x128xbf16>
    %c0_3 = arith.constant 0 : index
    %c0_4 = arith.constant 0 : index
    %c0_5 = arith.constant 0 : index
    %3 = vector.load %arg3[%c0_3, %c0_4, %c0_5] : memref<3x128x128xf32, #tpu.memory_space<vmem>>, vector<1x128x128xf32>
    %4 = vector.shape_cast %3 : vector<1x128x128xf32> to vector<128x128xf32>
    %5 = arith.truncf %4 : vector<128x128xf32> to vector<128x128xbf16>
    %cst = arith.constant dense<0.000000e+00> : vector<128x128xf32>
    %6 = tpu.matmul %2, %5, %cst {dimension_numbers = #tpu.dot_dimension_numbers<[1], [0], [0], [1], [0, 0, 1, 1], [], []>} : vector<128x128xbf16>, vector<128x128xbf16>, vector<128x128xf32> -> vector<128x128xf32>
    %7 = arith.truncf %6 : vector<128x128xf32> to vector<128x128xbf16>
    %cst_6 = arith.constant dense<0.000000e+00> : vector<128x128xf32>
    %8 = tpu.matmul %0, %7, %cst_6 {dimension_numbers = #tpu.dot_dimension_numbers<[1], [0], [0], [1], [0, 0, 1, 1], [], []>} : vector<128x128xbf16>, vector<128x128xbf16>, vector<128x128xf32> -> vector<128x128xf32>
    %c0_7 = arith.constant 0 : index
    %c0_8 = arith.constant 0 : index
    %c0_9 = arith.constant 0 : index
    %9 = vector.load %arg4[%c0_7, %c0_8, %c0_9] : memref<3x1x128xf32, #tpu.memory_space<vmem>>, vector<1x1x128xf32>
    %10 = vector.shape_cast %9 : vector<1x1x128xf32> to vector<1x128xf32>
    %11 = vector.broadcast %10 : vector<1x128xf32> to vector<128x128xf32>
    %12 = arith.addf %8, %11 : vector<128x128xf32>
    %cst_10 = arith.constant 0.000000e+00 : f32
    %13 = vector.broadcast %cst_10 : f32 to vector<128x128xf32>
    %14 = arith.maximumf %12, %13 : vector<128x128xf32>
    %15 = arith.truncf %14 : vector<128x128xf32> to vector<128x128xbf16>
    %c1 = arith.constant 1 : index
    %c0_11 = arith.constant 0 : index
    %c0_12 = arith.constant 0 : index
    %16 = vector.load %arg3[%c1, %c0_11, %c0_12] : memref<3x128x128xf32, #tpu.memory_space<vmem>>, vector<1x128x128xf32>
    %17 = vector.shape_cast %16 : vector<1x128x128xf32> to vector<128x128xf32>
    %18 = arith.truncf %17 : vector<128x128xf32> to vector<128x128xbf16>
    %cst_13 = arith.constant dense<0.000000e+00> : vector<128x128xf32>
    %19 = tpu.matmul %15, %18, %cst_13 {dimension_numbers = #tpu.dot_dimension_numbers<[1], [0], [0], [1], [0, 0, 1, 1], [], []>} : vector<128x128xbf16>, vector<128x128xbf16>, vector<128x128xf32> -> vector<128x128xf32>
    %20 = arith.truncf %19 : vector<128x128xf32> to vector<128x128xbf16>
    %cst_14 = arith.constant dense<0.000000e+00> : vector<128x128xf32>
    %21 = tpu.matmul %0, %20, %cst_14 {dimension_numbers = #tpu.dot_dimension_numbers<[1], [0], [0], [1], [0, 0, 1, 1], [], []>} : vector<128x128xbf16>, vector<128x128xbf16>, vector<128x128xf32> -> vector<128x128xf32>
    %c1_15 = arith.constant 1 : index
    %c0_16 = arith.constant 0 : index
    %c0_17 = arith.constant 0 : index
    %22 = vector.load %arg4[%c1_15, %c0_16, %c0_17] : memref<3x1x128xf32, #tpu.memory_space<vmem>>, vector<1x1x128xf32>
    %23 = vector.shape_cast %22 : vector<1x1x128xf32> to vector<1x128xf32>
    %24 = vector.broadcast %23 : vector<1x128xf32> to vector<128x128xf32>
    %25 = arith.addf %21, %24 : vector<128x128xf32>
    %cst_18 = arith.constant 0.000000e+00 : f32
    %26 = vector.broadcast %cst_18 : f32 to vector<128x128xf32>
    %27 = arith.maximumf %25, %26 : vector<128x128xf32>
    %28 = arith.truncf %27 : vector<128x128xf32> to vector<128x128xbf16>
    %c2 = arith.constant 2 : index
    %c0_19 = arith.constant 0 : index
    %c0_20 = arith.constant 0 : index
    %29 = vector.load %arg3[%c2, %c0_19, %c0_20] : memref<3x128x128xf32, #tpu.memory_space<vmem>>, vector<1x128x128xf32>
    %30 = vector.shape_cast %29 : vector<1x128x128xf32> to vector<128x128xf32>
    %31 = arith.truncf %30 : vector<128x128xf32> to vector<128x128xbf16>
    %cst_21 = arith.constant dense<0.000000e+00> : vector<128x128xf32>
    %32 = tpu.matmul %28, %31, %cst_21 {dimension_numbers = #tpu.dot_dimension_numbers<[1], [0], [0], [1], [0, 0, 1, 1], [], []>} : vector<128x128xbf16>, vector<128x128xbf16>, vector<128x128xf32> -> vector<128x128xf32>
    %33 = arith.truncf %32 : vector<128x128xf32> to vector<128x128xbf16>
    %cst_22 = arith.constant dense<0.000000e+00> : vector<128x128xf32>
    %34 = tpu.matmul %0, %33, %cst_22 {dimension_numbers = #tpu.dot_dimension_numbers<[1], [0], [0], [1], [0, 0, 1, 1], [], []>} : vector<128x128xbf16>, vector<128x128xbf16>, vector<128x128xf32> -> vector<128x128xf32>
    %c2_23 = arith.constant 2 : index
    %c0_24 = arith.constant 0 : index
    %c0_25 = arith.constant 0 : index
    %35 = vector.load %arg4[%c2_23, %c0_24, %c0_25] : memref<3x1x128xf32, #tpu.memory_space<vmem>>, vector<1x1x128xf32>
    %36 = vector.shape_cast %35 : vector<1x1x128xf32> to vector<1x128xf32>
    %37 = vector.broadcast %36 : vector<1x128xf32> to vector<128x128xf32>
    %38 = arith.addf %34, %37 : vector<128x128xf32>
    %c0_26 = arith.constant 0 : index
    %c0_27 = arith.constant 0 : index
    %c0_28 = arith.constant 0 : index
    %39 = vector.load %arg5[%c0_26, %c0_27, %c0_28] : memref<3x128x128xf32, #tpu.memory_space<vmem>>, vector<1x128x128xf32>
    %40 = vector.shape_cast %39 : vector<1x128x128xf32> to vector<128x128xf32>
    %cst_29 = arith.constant dense<0.000000e+00> : vector<128x128xf32>
    %41 = tpu.matmul %38, %40, %cst_29 {dimension_numbers = #tpu.dot_dimension_numbers<[1], [0], [0], [1], [0, 0, 1, 1], [], []>} : vector<128x128xf32>, vector<128x128xf32>, vector<128x128xf32> -> vector<128x128xf32>
    %c0_30 = arith.constant 0 : index
    %c0_31 = arith.constant 0 : index
    %c0_32 = arith.constant 0 : index
    %42 = vector.load %arg6[%c0_30, %c0_31, %c0_32] : memref<3x1x128xf32, #tpu.memory_space<vmem>>, vector<1x1x128xf32>
    %43 = vector.shape_cast %42 : vector<1x1x128xf32> to vector<1x128xf32>
    %44 = vector.broadcast %43 : vector<1x128xf32> to vector<128x128xf32>
    %45 = arith.addf %41, %44 : vector<128x128xf32>
    %cst_33 = arith.constant 0.000000e+00 : f32
    %46 = vector.broadcast %cst_33 : f32 to vector<128x128xf32>
    %47 = arith.maximumf %45, %46 : vector<128x128xf32>
    %c1_34 = arith.constant 1 : index
    %c0_35 = arith.constant 0 : index
    %c0_36 = arith.constant 0 : index
    %48 = vector.load %arg5[%c1_34, %c0_35, %c0_36] : memref<3x128x128xf32, #tpu.memory_space<vmem>>, vector<1x128x128xf32>
    %49 = vector.shape_cast %48 : vector<1x128x128xf32> to vector<128x128xf32>
    %cst_37 = arith.constant dense<0.000000e+00> : vector<128x128xf32>
    %50 = tpu.matmul %47, %49, %cst_37 {dimension_numbers = #tpu.dot_dimension_numbers<[1], [0], [0], [1], [0, 0, 1, 1], [], []>} : vector<128x128xf32>, vector<128x128xf32>, vector<128x128xf32> -> vector<128x128xf32>
    %c1_38 = arith.constant 1 : index
    %c0_39 = arith.constant 0 : index
    %c0_40 = arith.constant 0 : index
    %51 = vector.load %arg6[%c1_38, %c0_39, %c0_40] : memref<3x1x128xf32, #tpu.memory_space<vmem>>, vector<1x1x128xf32>
    %52 = vector.shape_cast %51 : vector<1x1x128xf32> to vector<1x128xf32>
    %53 = vector.broadcast %52 : vector<1x128xf32> to vector<128x128xf32>
    %54 = arith.addf %50, %53 : vector<128x128xf32>
    %cst_41 = arith.constant 0.000000e+00 : f32
    %55 = vector.broadcast %cst_41 : f32 to vector<128x128xf32>
    %56 = arith.maximumf %54, %55 : vector<128x128xf32>
    %c2_42 = arith.constant 2 : index
    %c0_43 = arith.constant 0 : index
    %c0_44 = arith.constant 0 : index
    %57 = vector.load %arg5[%c2_42, %c0_43, %c0_44] : memref<3x128x128xf32, #tpu.memory_space<vmem>>, vector<1x128x128xf32>
    %58 = vector.shape_cast %57 : vector<1x128x128xf32> to vector<128x128xf32>
    %cst_45 = arith.constant dense<0.000000e+00> : vector<128x128xf32>
    %59 = tpu.matmul %56, %58, %cst_45 {dimension_numbers = #tpu.dot_dimension_numbers<[1], [0], [0], [1], [0, 0, 1, 1], [], []>} : vector<128x128xf32>, vector<128x128xf32>, vector<128x128xf32> -> vector<128x128xf32>
    %c2_46 = arith.constant 2 : index
    %c0_47 = arith.constant 0 : index
    %c0_48 = arith.constant 0 : index
    %60 = vector.load %arg6[%c2_46, %c0_47, %c0_48] : memref<3x1x128xf32, #tpu.memory_space<vmem>>, vector<1x1x128xf32>
    %61 = vector.shape_cast %60 : vector<1x1x128xf32> to vector<1x128xf32>
    %62 = vector.broadcast %61 : vector<1x128xf32> to vector<128x128xf32>
    %63 = arith.addf %59, %62 : vector<128x128xf32>
    %c0_49 = arith.constant 0 : index
    %c0_50 = arith.constant 0 : index
    %64 = vector.load %arg7[%c0_49, %c0_50] : memref<128x128xf32, #tpu.memory_space<vmem>>, vector<128x128xf32>
    tpu.vector_store %arg7[%c0_49, %c0_50], %63 {strides = array<i32>} : memref<128x128xf32, #tpu.memory_space<vmem>>, vector<128x128xf32>,
    return
  }
  func.func @transform_0(%arg0: i32) -> (i32, i32) {
    %c0_i32 = arith.constant 0 : i32
    %c0_i32_0 = arith.constant 0 : i32
    %c0_i32_1 = arith.constant 0 : i32
    return %c0_i32, %c0_i32_0 : i32, i32
  }
  func.func @transform_1(%arg0: i32) -> (i32, i32) {
    %c0_i32 = arith.constant 0 : i32
    %c0_i32_0 = arith.constant 0 : i32
    %c0_i32_1 = arith.constant 0 : i32
    return %c0_i32, %c0_i32_0 : i32, i32
  }
  func.func @transform_2(%arg0: i32) -> (i32, i32, i32) {
    %c0_i32 = arith.constant 0 : i32
    %c0_i32_0 = arith.constant 0 : i32
    %c0_i32_1 = arith.constant 0 : i32
    %c0_i32_2 = arith.constant 0 : i32
    return %c0_i32, %c0_i32_0, %c0_i32_1 : i32, i32, i32
  }
  func.func @transform_3(%arg0: i32) -> (i32, i32, i32) {
    %c0_i32 = arith.constant 0 : i32
    %c0_i32_0 = arith.constant 0 : i32
    %c0_i32_1 = arith.constant 0 : i32
    %c0_i32_2 = arith.constant 0 : i32
    return %c0_i32, %c0_i32_0, %c0_i32_1 : i32, i32, i32
  }
  func.func @transform_4(%arg0: i32) -> (i32, i32, i32) {
    %c0_i32 = arith.constant 0 : i32
    %c0_i32_0 = arith.constant 0 : i32
    %c0_i32_1 = arith.constant 0 : i32
    %c0_i32_2 = arith.constant 0 : i32
    return %c0_i32, %c0_i32_0, %c0_i32_1 : i32, i32, i32
  }
  func.func @transform_5(%arg0: i32) -> (i32, i32, i32) {
    %c0_i32 = arith.constant 0 : i32
    %c0_i32_0 = arith.constant 0 : i32
    %c0_i32_1 = arith.constant 0 : i32
    %c0_i32_2 = arith.constant 0 : i32
    return %c0_i32, %c0_i32_0, %c0_i32_1 : i32, i32, i32
  }
  func.func @transform_6(%arg0: i32) -> (i32, i32) {
    %c0_i32 = arith.constant 0 : i32
    %c0_i32_0 = arith.constant 0 : i32
    %c0_i32_1 = arith.constant 0 : i32
    return %c0_i32, %c0_i32_0 : i32, i32
  }
}

</mosaic_0001>

<llo_original>
// kernel: tpu_custom_call.1
$region0: #{tpu_custom_call.1}
  #allocation0 [shape = 'u32[]', space=smem, size = 0x4, offset = 0x4, fixed_abs, tag = 'smem constant byte address 0x4 - core index']
  #allocation1 [shape = 'u32[72,128]{1,0:T(1,128)}', space=vmem, size = 0x9000, scoped, tag = 'internal scratch']
  %s0 = inlined_call_operand.hbm [shape: bf16[128,128], index: 0, kind: input, shape index: {}]
  %s1 = inlined_call_operand.hbm [shape: f32[128,128], index: 1, kind: input, shape index: {}]
  %s2 = inlined_call_operand.hbm [shape: f32[3,128,128], index: 2, kind: input, shape index: {}]
  %s3 = inlined_call_operand.hbm [shape: f32[3,1,128], index: 3, kind: input, shape index: {}]
  %s4 = inlined_call_operand.hbm [shape: f32[3,128,128], index: 4, kind: input, shape index: {}]
  %s5 = inlined_call_operand.vmem [shape: f32[3,1,128], index: 5, kind: input, shape index: {}]
  %s6 = inlined_call_operand.hbm [shape: f32[128,128], index: 6, kind: output, shape index: {}]
  %s7 = sld [smem:[#allocation0]]
  $region54: #{tpu_custom_call.1} parent=0
    _
  %s9 = ssub.s32 1, %s7
  %s10 = scalar_select 0, %s9, %s7
  $region1: #{tpu_custom_call.1} parent=0
    #allocation2 [shape = 'u8[32768]{0}', space=vmem, size = 0x8000, scoped, tag = 'input window, operand 0, single buffered']
    #allocation3 [shape = 's32[1]{0}', space=sflag, size = 0x4, scoped, tag = 'scoped memory for tpu_custom_call.1']
    #allocation4 [shape = 's32[1]{0}', space=sflag, size = 0x4, scoped, tag = 'scoped memory for tpu_custom_call.1']
    #allocation5 [shape = 'u8[65536]{0}', space=vmem, size = 0x10000, scoped, tag = 'input window, operand 1, single buffered']
    #allocation6 [shape = 's32[1]{0}', space=sflag, size = 0x4, scoped, tag = 'scoped memory for tpu_custom_call.1']
    #allocation7 [shape = 'u8[196608]{0}', space=vmem, size = 0x30000, scoped, tag = 'input window, operand 2, single buffered']
    #allocation8 [shape = 'u8[1536]{0}', space=vmem, size = 0x800, scoped, tag = 'input window, operand 3, single buffered']
    #allocation9 [shape = 's32[1]{0}', space=sflag, size = 0x4, scoped, tag = 'scoped memory for tpu_custom_call.1']
    #allocation10 [shape = 'u8[196608]{0}', space=vmem, size = 0x30000, scoped, tag = 'input window, operand 4, single buffered']
    #allocation11 [shape = 'u8[65536]{0}', space=vmem, size = 0x10000, scoped, tag = 'output window, operand 0, single buffered']
    %11 = vsyncpa [#allocation3], 0
    %12 = vsyncpa [#allocation6], 0
    %13 = vsyncpa [#allocation9], 0
    %14 = vsyncpa [#allocation4], 0
    // Predicated region
    $region2: #{tpu_custom_call.1} parent=1 // pred_check
      _
    $region3: #{tpu_custom_call.1} parent=1 // pred_check_branch
      %16 = sbr.rel (0) target = $region5
    $region4: #{tpu_custom_call.1} parent=1 // pred_region
      %18 = vsyncadd [#allocation3], 0
      %s19 = sshll.u32 %s0, 4
      %s20 = int_to_ptr.hbm [resolvable:$true] %s19
      %s21 = sshll.u32 [#allocation2], 4
      %s22 = int_to_ptr.vmem [resolvable:$true] %s21
      %27 = dma.hbm_to_vmem [thread:$0]  %s20, 1024, %s22, [#allocation3], 64, 64, 4
    $region5: #{tpu_custom_call.1} parent=1 // pred_fallthru
      _
    // Predicated region
    $region6: #{tpu_custom_call.1} parent=1 // pred_check
      _
    $region7: #{tpu_custom_call.1} parent=1 // pred_check_branch
      %29 = sbr.rel (0) target = $region9
    $region8: #{tpu_custom_call.1} parent=1 // pred_region
      %31 = vsyncadd [#allocation6], 0
      %s32 = sshll.u32 %s1, 4
      %s33 = int_to_ptr.hbm [resolvable:$true] %s32
      %s34 = sshll.u32 [#allocation5], 4
      %s35 = int_to_ptr.vmem [resolvable:$true] %s34
      %40 = dma.hbm_to_vmem [thread:$0]  %s33, 2048, %s35, [#allocation6], 128, 128, 8
    $region9: #{tpu_custom_call.1} parent=1 // pred_fallthru
      _
    // Predicated region
    $region10: #{tpu_custom_call.1} parent=1 // pred_check
      _
    $region11: #{tpu_custom_call.1} parent=1 // pred_check_branch
      %42 = sbr.rel (0) target = $region13
    $region12: #{tpu_custom_call.1} parent=1 // pred_region
      %44 = vsyncadd [#allocation6], 0
      %s45 = sshll.u32 %s2, 4
      %s46 = int_to_ptr.hbm [resolvable:$true] %s45
      %s47 = sshll.u32 [#allocation7], 4
      %s48 = int_to_ptr.vmem [resolvable:$true] %s47
      %53 = dma.hbm_to_vmem [thread:$0]  %s46, 6144, %s48, [#allocation6], 128, 128, 8
    $region13: #{tpu_custom_call.1} parent=1 // pred_fallthru
      _
    // Predicated region
    $region14: #{tpu_custom_call.1} parent=1 // pred_check
      _
    $region15: #{tpu_custom_call.1} parent=1 // pred_check_branch
      %55 = sbr.rel (0) target = $region17
    $region16: #{tpu_custom_call.1} parent=1 // pred_region
      %57 = vsyncadd [#allocation9], 0
      %s58 = sshll.u32 %s3, 4
      %s59 = int_to_ptr.hbm [resolvable:$true] %s58
      %s60 = sshll.u32 [#allocation8], 4
      %s61 = int_to_ptr.vmem [resolvable:$true] %s60
      %66 = dma.hbm_to_vmem [thread:$0]  %s59, 48, %s61, [#allocation9], 16, 16, 1
    $region17: #{tpu_custom_call.1} parent=1 // pred_fallthru
      _
    // Predicated region
    $region18: #{tpu_custom_call.1} parent=1 // pred_check
      _
    $region19: #{tpu_custom_call.1} parent=1 // pred_check_branch
      %68 = sbr.rel (0) target = $region21
    $region20: #{tpu_custom_call.1} parent=1 // pred_region
      %70 = vsyncadd [#allocation9], 0
      %s71 = sshll.u32 %s4, 4
      %s72 = int_to_ptr.hbm [resolvable:$true] %s71
      %s73 = sshll.u32 [#allocation10], 4
      %s74 = int_to_ptr.vmem [resolvable:$true] %s73
      %79 = dma.hbm_to_vmem [thread:$0]  %s72, 6144, %s74, [#allocation9], 128, 128, 8
    $region21: #{tpu_custom_call.1} parent=1 // pred_fallthru
      _
    // Predicated region
    $region22: #{tpu_custom_call.1} parent=1 // pred_check
      _
    $region23: #{tpu_custom_call.1} parent=1 // pred_check_branch
      %81 = sbr.rel (0) target = $region25
    $region24: #{tpu_custom_call.1} parent=1 // pred_region
      _
    $region25: #{tpu_custom_call.1} parent=1 // pred_fallthru
      _
    // Predicated region
    $region26: #{tpu_custom_call.1} parent=1 // pred_check
      _
    $region27: #{tpu_custom_call.1} parent=1 // pred_check_branch
      %83 = sbr.rel (0) target = $region29
    $region28: #{tpu_custom_call.1} parent=1 // pred_region
      %85 = dma.done [#allocation3], 1024
    $region29: #{tpu_custom_call.1} parent=1 // pred_fallthru
      _
    // Predicated region
    $region30: #{tpu_custom_call.1} parent=1 // pred_check
      _
    $region31: #{tpu_custom_call.1} parent=1 // pred_check_branch
      %87 = sbr.rel (0) target = $region33
    $region32: #{tpu_custom_call.1} parent=1 // pred_region
      %89 = dma.done [#allocation6], 2048
    $region33: #{tpu_custom_call.1} parent=1 // pred_fallthru
      _
    // Predicated region
    $region34: #{tpu_custom_call.1} parent=1 // pred_check
      _
    $region35: #{tpu_custom_call.1} parent=1 // pred_check_branch
      %91 = sbr.rel (0) target = $region37
    $region36: #{tpu_custom_call.1} parent=1 // pred_region
      %93 = dma.done [#allocation6], 6144
    $region37: #{tpu_custom_call.1} parent=1 // pred_fallthru
      _
    // Predicated region
    $region38: #{tpu_custom_call.1} parent=1 // pred_check
      _
    $region39: #{tpu_custom_call.1} parent=1 // pred_check_branch
      %95 = sbr.rel (0) target = $region41
    $region40: #{tpu_custom_call.1} parent=1 // pred_region
      %97 = dma.done [#allocation9], 48
    $region41: #{tpu_custom_call.1} parent=1 // pred_fallthru
      _
    // Predicated region
    $region42: #{tpu_custom_call.1} parent=1 // pred_check
      _
    $region43: #{tpu_custom_call.1} parent=1 // pred_check_branch
      %99 = sbr.rel (0) target = $region45
    $region44: #{tpu_custom_call.1} parent=1 // pred_region
      %101 = dma.done [#allocation9], 6144
    $region45: #{tpu_custom_call.1} parent=1 // pred_fallthru
      _
    %v102 = vld [vmem:[#allocation2] sm:$0xf]
    %v103 = vld [vmem:[#allocation2 + $0x4] sm:$0xf]
    %v104 = vld [vmem:[#allocation2 + $0x8] sm:$0xf]
    %v105 = vld [vmem:[#allocation2 + $0xc] sm:$0xf]
    %v106 = vld [vmem:[#allocation2 + $0x10] sm:$0xf]
    %v107 = vld [vmem:[#allocation2 + $0x14] sm:$0xf]
    %v108 = vld [vmem:[#allocation2 + $0x18] sm:$0xf]
    %v109 = vld [vmem:[#allocation2 + $0x1c] sm:$0xf]
    %v110 = vld [vmem:[#allocation2 + $0x20] sm:$0xf]
    %v111 = vld [vmem:[#allocation2 + $0x24] sm:$0xf]
    %v112 = vld [vmem:[#allocation2 + $0x28] sm:$0xf]
    %v113 = vld [vmem:[#allocation2 + $0x2c] sm:$0xf]
    %v114 = vld [vmem:[#allocation2 + $0x30] sm:$0xf]
    %v115 = vld [vmem:[#allocation2 + $0x34] sm:$0xf]
    %v116 = vld [vmem:[#allocation2 + $0x38] sm:$0xf]
    %v117 = vld [vmem:[#allocation2 + $0x3c] sm:$0xf]
    %v118 = vld [vmem:[#allocation5] sm:$0xff]
    %v119 = vld [vmem:[#allocation5 + $0x8] sm:$0xff]
    %v120 = vld [vmem:[#allocation5 + $0x10] sm:$0xff]
    %v121 = vld [vmem:[#allocation5 + $0x18] sm:$0xff]
    %v122 = vld [vmem:[#allocation5 + $0x20] sm:$0xff]
    %v123 = vld [vmem:[#allocation5 + $0x28] sm:$0xff]
    %v124 = vld [vmem:[#allocation5 + $0x30] sm:$0xff]
    %v125 = vld [vmem:[#allocation5 + $0x38] sm:$0xff]
    %v126 = vld [vmem:[#allocation5 + $0x40] sm:$0xff]
    %v127 = vld [vmem:[#allocation5 + $0x48] sm:$0xff]
    %v128 = vld [vmem:[#allocation5 + $0x50] sm:$0xff]
    %v129 = vld [vmem:[#allocation5 + $0x58] sm:$0xff]
    %v130 = vld [vmem:[#allocation5 + $0x60] sm:$0xff]
    %v131 = vld [vmem:[#allocation5 + $0x68] sm:$0xff]
    %v132 = vld [vmem:[#allocation5 + $0x70] sm:$0xff]
    %v133 = vld [vmem:[#allocation5 + $0x78] sm:$0xff]
    %v134 = vpack.c.bf16 %v119, %v118
    %v135 = vpack.c.bf16 %v121, %v120
    %v136 = vpack.c.bf16 %v123, %v122
    %v137 = vpack.c.bf16 %v125, %v124
    %v138 = vpack.c.bf16 %v127, %v126
    %v139 = vpack.c.bf16 %v129, %v128
    %v140 = vpack.c.bf16 %v131, %v130
    %v141 = vpack.c.bf16 %v133, %v132
    %v142 = vld [vmem:[#allocation7] sm:$0xff]
    %v143 = vld [vmem:[#allocation7 + $0x8] sm:$0xff]
    %v144 = vld [vmem:[#allocation7 + $0x10] sm:$0xff]
    %v145 = vld [vmem:[#allocation7 + $0x18] sm:$0xff]
    %v146 = vld [vmem:[#allocation7 + $0x20] sm:$0xff]
    %v147 = vld [vmem:[#allocation7 + $0x28] sm:$0xff]
    %v148 = vld [vmem:[#allocation7 + $0x30] sm:$0xff]
    %v149 = vld [vmem:[#allocation7 + $0x38] sm:$0xff]
    %v150 = vld [vmem:[#allocation7 + $0x40] sm:$0xff]
    %v151 = vld [vmem:[#allocation7 + $0x48] sm:$0xff]
    %v152 = vld [vmem:[#allocation7 + $0x50] sm:$0xff]
    %v153 = vld [vmem:[#allocation7 + $0x58] sm:$0xff]
    %v154 = vld [vmem:[#allocation7 + $0x60] sm:$0xff]
    %v155 = vld [vmem:[#allocation7 + $0x68] sm:$0xff]
    %v156 = vld [vmem:[#allocation7 + $0x70] sm:$0xff]
    %v157 = vld [vmem:[#allocation7 + $0x78] sm:$0xff]
    %v158 = vpack.c.bf16 %v143, %v142
    %v159 = vpack.c.bf16 %v145, %v144
    %v160 = vpack.c.bf16 %v147, %v146
    %v161 = vpack.c.bf16 %v149, %v148
    %v162 = vpack.c.bf16 %v151, %v150
    %v163 = vpack.c.bf16 %v153, %v152
    %v164 = vpack.c.bf16 %v155, %v154
    %v165 = vpack.c.bf16 %v157, %v156
    %166 = vmatpush.bf16.msra.mxu0 %v165
    %167 = vmatpush.bf16.msra.mxu0 %v164
    %168 = vmatpush.bf16.msra.mxu0 %v163
    %169 = vmatpush.bf16.msra.mxu0 %v162
    %170 = vmatpush.bf16.msra.mxu0 %v161
    %171 = vmatpush.bf16.msra.mxu0 %v160
    %172 = vmatpush.bf16.msra.mxu0 %v159
    %173 = vmatpush.bf16.msra.mxu0 %v158
    %174 = vmatmul.bf16.gmra.mxu0 %v134
    %v175 = vpop.f32.mrf.mxu0
    %v176 = vadd.f32 0.0, %v175
    %v177 = vpop.f32.mrf.mxu0
    %v178 = vadd.f32 0.0, %v177
    %179 = vmatmul.bf16.gmra.mxu0 %v135
    %v180 = vpop.f32.mrf.mxu0
    %v181 = vadd.f32 0.0, %v180
    %v182 = vpop.f32.mrf.mxu0
    %v183 = vadd.f32 0.0, %v182
    %184 = vmatmul.bf16.gmra.mxu0 %v136
    %v185 = vpop.f32.mrf.mxu0
    %v186 = vadd.f32 0.0, %v185
    %v187 = vpop.f32.mrf.mxu0
    %v188 = vadd.f32 0.0, %v187
    %189 = vmatmul.bf16.gmra.mxu0 %v137
    %v190 = vpop.f32.mrf.mxu0
    %v191 = vadd.f32 0.0, %v190
    %v192 = vpop.f32.mrf.mxu0
    %v193 = vadd.f32 0.0, %v192
    %194 = vmatmul.bf16.gmra.mxu0 %v138
    %v195 = vpop.f32.mrf.mxu0
    %v196 = vadd.f32 0.0, %v195
    %v197 = vpop.f32.mrf.mxu0
    %v198 = vadd.f32 0.0, %v197
    %199 = vmatmul.bf16.gmra.mxu0 %v139
    %v200 = vpop.f32.mrf.mxu0
    %v201 = vadd.f32 0.0, %v200
    %v202 = vpop.f32.mrf.mxu0
    %v203 = vadd.f32 0.0, %v202
    %204 = vmatmul.bf16.gmra.mxu0 %v140
    %v205 = vpop.f32.mrf.mxu0
    %v206 = vadd.f32 0.0, %v205
    %v207 = vpop.f32.mrf.mxu0
    %v208 = vadd.f32 0.0, %v207
    %209 = vmatmul.bf16.gmra.mxu0 %v141
    %v210 = vpop.f32.mrf.mxu0
    %v211 = vadd.f32 0.0, %v210
    %v212 = vpop.f32.mrf.mxu0
    %v213 = vadd.f32 0.0, %v212
    %214 = vdwg.mxu0
    %v215 = vpack.c.bf16 %v178, %v176
    %v216 = vpack.c.bf16 %v183, %v181
    %v217 = vpack.c.bf16 %v188, %v186
    %v218 = vpack.c.bf16 %v193, %v191
    %v219 = vpack.c.bf16 %v198, %v196
    %v220 = vpack.c.bf16 %v203, %v201
    %v221 = vpack.c.bf16 %v208, %v206
    %v222 = vpack.c.bf16 %v213, %v211
    %v223 = vld [vmem:[#allocation8] sm:$0x1]
    %v225 = vperm.slane %v223, 0
    %v243 = vunpack.c.l.b16 %v102
    %v244 = vunpack.c.l.b16 %v103
    %v245 = vunpack.c.l.b16 %v104
    %v246 = vunpack.c.l.b16 %v105
    %v247 = vunpack.c.l.b16 %v106
    %v248 = vunpack.c.l.b16 %v107
    %v249 = vunpack.c.l.b16 %v108
    %v250 = vunpack.c.l.b16 %v109
    %v251 = vunpack.c.l.b16 %v110
    %v252 = vunpack.c.l.b16 %v111
    %v253 = vunpack.c.l.b16 %v112
    %v254 = vunpack.c.l.b16 %v113
    %v255 = vunpack.c.l.b16 %v114
    %v256 = vunpack.c.l.b16 %v115
    %v257 = vunpack.c.l.b16 %v116
    %v258 = vunpack.c.l.b16 %v117
    %v259 = vpack.c.b16 %v244, %v243
    %v260 = vpack.c.b16 %v246, %v245
    %v261 = vpack.c.b16 %v248, %v247
    %v262 = vpack.c.b16 %v250, %v249
    %v263 = vpack.c.b16 %v252, %v251
    %v264 = vpack.c.b16 %v254, %v253
    %v265 = vpack.c.b16 %v256, %v255
    %v266 = vpack.c.b16 %v258, %v257
    %275 = vmatpush.bf16.msra.mxu0 %v222
    %276 = vmatpush.bf16.msra.mxu0 %v221
    %277 = vmatpush.bf16.msra.mxu0 %v220
    %278 = vmatpush.bf16.msra.mxu0 %v219
    %279 = vmatpush.bf16.msra.mxu0 %v218
    %280 = vmatpush.bf16.msra.mxu0 %v217
    %281 = vmatpush.bf16.msra.mxu0 %v216
    %282 = vmatpush.bf16.msra.mxu0 %v215
    %283 = vmatmul.bf16.gmra.mxu0 %v259
    %v284 = vpop.f32.mrf.mxu0
    %v285 = vadd.f32 %v225, %v284
    %v286 = vpop.f32.mrf.mxu0
    %v287 = vadd.f32 %v225, %v286
    %288 = vmatmul.bf16.gmra.mxu0 %v260
    %v289 = vpop.f32.mrf.mxu0
    %v290 = vadd.f32 %v225, %v289
    %v291 = vpop.f32.mrf.mxu0
    %v292 = vadd.f32 %v225, %v291
    %293 = vmatmul.bf16.gmra.mxu0 %v261
    %v294 = vpop.f32.mrf.mxu0
    %v295 = vadd.f32 %v225, %v294
    %v296 = vpop.f32.mrf.mxu0
    %v297 = vadd.f32 %v225, %v296
    %298 = vmatmul.bf16.gmra.mxu0 %v262
    %v299 = vpop.f32.mrf.mxu0
    %v300 = vadd.f32 %v225, %v299
    %v301 = vpop.f32.mrf.mxu0
    %v302 = vadd.f32 %v225, %v301
    %303 = vmatmul.bf16.gmra.mxu0 %v263
    %v304 = vpop.f32.mrf.mxu0
    %v305 = vadd.f32 %v225, %v304
    %v306 = vpop.f32.mrf.mxu0
    %v307 = vadd.f32 %v225, %v306
    %308 = vmatmul.bf16.gmra.mxu0 %v264
    %v309 = vpop.f32.mrf.mxu0
    %v310 = vadd.f32 %v225, %v309
    %v311 = vpop.f32.mrf.mxu0
    %v312 = vadd.f32 %v225, %v311
    %313 = vmatmul.bf16.gmra.mxu0 %v265
    %v314 = vpop.f32.mrf.mxu0
    %v315 = vadd.f32 %v225, %v314
    %v316 = vpop.f32.mrf.mxu0
    %v317 = vadd.f32 %v225, %v316
    %318 = vmatmul.bf16.gmra.mxu0 %v266
    %v319 = vpop.f32.mrf.mxu0
    %v320 = vadd.f32 %v225, %v319
    %v321 = vpop.f32.mrf.mxu0
    %v322 = vadd.f32 %v225, %v321
    %323 = vdwg.mxu0
    %v324 = vmax.f32 %v285, 0.0
    %v325 = vmax.f32 %v287, 0.0
    %v326 = vmax.f32 %v290, 0.0
    %v327 = vmax.f32 %v292, 0.0
    %v328 = vmax.f32 %v295, 0.0
    %v329 = vmax.f32 %v297, 0.0
    %v330 = vmax.f32 %v300, 0.0
    %v331 = vmax.f32 %v302, 0.0
    %v332 = vmax.f32 %v305, 0.0
    %v333 = vmax.f32 %v307, 0.0
    %v334 = vmax.f32 %v310, 0.0
    %v335 = vmax.f32 %v312, 0.0
    %v336 = vmax.f32 %v315, 0.0
    %v337 = vmax.f32 %v317, 0.0
    %v338 = vmax.f32 %v320, 0.0
    %v339 = vmax.f32 %v322, 0.0
    %v340 = vpack.c.bf16 %v325, %v324
    %v341 = vpack.c.bf16 %v327, %v326
    %v342 = vpack.c.bf16 %v329, %v328
    %v343 = vpack.c.bf16 %v331, %v330
    %v344 = vpack.c.bf16 %v333, %v332
    %v345 = vpack.c.bf16 %v335, %v334
    %v346 = vpack.c.bf16 %v337, %v336
    %v347 = vpack.c.bf16 %v339, %v338
    %s348 = scalar_lea.vmem [#allocation7], 128
    %v349 = vld [vmem:[%s348] sm:$0xff]
    %v350 = vld [vmem:[%s348 + $0x8] sm:$0xff]
    %v351 = vld [vmem:[%s348 + $0x10] sm:$0xff]
    %v352 = vld [vmem:[%s348 + $0x18] sm:$0xff]
    %v353 = vld [vmem:[%s348 + $0x20] sm:$0xff]
    %v354 = vld [vmem:[%s348 + $0x28] sm:$0xff]
    %v355 = vld [vmem:[%s348 + $0x30] sm:$0xff]
    %v356 = vld [vmem:[%s348 + $0x38] sm:$0xff]
    %v357 = vld [vmem:[%s348 + $0x40] sm:$0xff]
    %v358 = vld [vmem:[%s348 + $0x48] sm:$0xff]
    %v359 = vld [vmem:[%s348 + $0x50] sm:$0xff]
    %v360 = vld [vmem:[%s348 + $0x58] sm:$0xff]
    %v361 = vld [vmem:[%s348 + $0x60] sm:$0xff]
    %v362 = vld [vmem:[%s348 + $0x68] sm:$0xff]
    %v363 = vld [vmem:[%s348 + $0x70] sm:$0xff]
    %v364 = vld [vmem:[%s348 + $0x78] sm:$0xff]
    %v365 = vpack.c.bf16 %v350, %v349
    %v366 = vpack.c.bf16 %v352, %v351
    %v367 = vpack.c.bf16 %v354, %v353
    %v368 = vpack.c.bf16 %v356, %v355
    %v369 = vpack.c.bf16 %v358, %v357
    %v370 = vpack.c.bf16 %v360, %v359
    %v371 = vpack.c.bf16 %v362, %v361
    %v372 = vpack.c.bf16 %v364, %v363
    %373 = vmatpush.bf16.msra.mxu0 %v372
    %374 = vmatpush.bf16.msra.mxu0 %v371
    %375 = vmatpush.bf16.msra.mxu0 %v370
    %376 = vmatpush.bf16.msra.mxu0 %v369
    %377 = vmatpush.bf16.msra.mxu0 %v368
    %378 = vmatpush.bf16.msra.mxu0 %v367
    %379 = vmatpush.bf16.msra.mxu0 %v366
    %380 = vmatpush.bf16.msra.mxu0 %v365
    %381 = vmatmul.bf16.gmra.mxu0 %v340
    %v382 = vpop.f32.mrf.mxu0
    %v383 = vadd.f32 0.0, %v382
    %v384 = vpop.f32.mrf.mxu0
    %v385 = vadd.f32 0.0, %v384
    %386 = vmatmul.bf16.gmra.mxu0 %v341
    %v387 = vpop.f32.mrf.mxu0
    %v388 = vadd.f32 0.0, %v387
    %v389 = vpop.f32.mrf.mxu0
    %v390 = vadd.f32 0.0, %v389
    %391 = vmatmul.bf16.gmra.mxu0 %v342
    %v392 = vpop.f32.mrf.mxu0
    %v393 = vadd.f32 0.0, %v392
    %v394 = vpop.f32.mrf.mxu0
    %v395 = vadd.f32 0.0, %v394
    %396 = vmatmul.bf16.gmra.mxu0 %v343
    %v397 = vpop.f32.mrf.mxu0
    %v398 = vadd.f32 0.0, %v397
    %v399 = vpop.f32.mrf.mxu0
    %v400 = vadd.f32 0.0, %v399
    %401 = vmatmul.bf16.gmra.mxu0 %v344
    %v402 = vpop.f32.mrf.mxu0
    %v403 = vadd.f32 0.0, %v402
    %v404 = vpop.f32.mrf.mxu0
    %v405 = vadd.f32 0.0, %v404
    %406 = vmatmul.bf16.gmra.mxu0 %v345
    %v407 = vpop.f32.mrf.mxu0
    %v408 = vadd.f32 0.0, %v407
    %v409 = vpop.f32.mrf.mxu0
    %v410 = vadd.f32 0.0, %v409
    %411 = vmatmul.bf16.gmra.mxu0 %v346
    %v412 = vpop.f32.mrf.mxu0
    %v413 = vadd.f32 0.0, %v412
    %v414 = vpop.f32.mrf.mxu0
    %v415 = vadd.f32 0.0, %v414
    %416 = vmatmul.bf16.gmra.mxu0 %v347
    %v417 = vpop.f32.mrf.mxu0
    %v418 = vadd.f32 0.0, %v417
    %v419 = vpop.f32.mrf.mxu0
    %v420 = vadd.f32 0.0, %v419
    %421 = vdwg.mxu0
    %v422 = vpack.c.bf16 %v385, %v383
    %v423 = vpack.c.bf16 %v390, %v388
    %v424 = vpack.c.bf16 %v395, %v393
    %v425 = vpack.c.bf16 %v400, %v398
    %v426 = vpack.c.bf16 %v405, %v403
    %v427 = vpack.c.bf16 %v410, %v408
    %v428 = vpack.c.bf16 %v415, %v413
    %v429 = vpack.c.bf16 %v420, %v418
    %s430 = scalar_lea.vmem [#allocation8], 1
    %v431 = vld [vmem:[%s430] sm:$0x1]
    %v433 = vperm.slane %v431, 0
    %435 = vmatpush.bf16.msra.mxu0 %v429
    %436 = vmatpush.bf16.msra.mxu0 %v428
    %437 = vmatpush.bf16.msra.mxu0 %v427
    %438 = vmatpush.bf16.msra.mxu0 %v426
    %439 = vmatpush.bf16.msra.mxu0 %v425
    %440 = vmatpush.bf16.msra.mxu0 %v424
    %441 = vmatpush.bf16.msra.mxu0 %v423
    %442 = vmatpush.bf16.msra.mxu0 %v422
    %443 = vmatmul.bf16.gmra.mxu0 %v259
    %v444 = vpop.f32.mrf.mxu0
    %v445 = vadd.f32 %v433, %v444
    %v446 = vpop.f32.mrf.mxu0
    %v447 = vadd.f32 %v433, %v446
    %448 = vmatmul.bf16.gmra.mxu0 %v260
    %v449 = vpop.f32.mrf.mxu0
    %v450 = vadd.f32 %v433, %v449
    %v451 = vpop.f32.mrf.mxu0
    %v452 = vadd.f32 %v433, %v451
    %453 = vmatmul.bf16.gmra.mxu0 %v261
    %v454 = vpop.f32.mrf.mxu0
    %v455 = vadd.f32 %v433, %v454
    %v456 = vpop.f32.mrf.mxu0
    %v457 = vadd.f32 %v433, %v456
    %458 = vmatmul.bf16.gmra.mxu0 %v262
    %v459 = vpop.f32.mrf.mxu0
    %v460 = vadd.f32 %v433, %v459
    %v461 = vpop.f32.mrf.mxu0
    %v462 = vadd.f32 %v433, %v461
    %463 = vmatmul.bf16.gmra.mxu0 %v263
    %v464 = vpop.f32.mrf.mxu0
    %v465 = vadd.f32 %v433, %v464
    %v466 = vpop.f32.mrf.mxu0
    %v467 = vadd.f32 %v433, %v466
    %468 = vmatmul.bf16.gmra.mxu0 %v264
    %v469 = vpop.f32.mrf.mxu0
    %v470 = vadd.f32 %v433, %v469
    %v471 = vpop.f32.mrf.mxu0
    %v472 = vadd.f32 %v433, %v471
    %473 = vmatmul.bf16.gmra.mxu0 %v265
    %v474 = vpop.f32.mrf.mxu0
    %v475 = vadd.f32 %v433, %v474
    %v476 = vpop.f32.mrf.mxu0
    %v477 = vadd.f32 %v433, %v476
    %478 = vmatmul.bf16.gmra.mxu0 %v266
    %v479 = vpop.f32.mrf.mxu0
    %v480 = vadd.f32 %v433, %v479
    %v481 = vpop.f32.mrf.mxu0
    %v482 = vadd.f32 %v433, %v481
    %483 = vdwg.mxu0
    %v484 = vmax.f32 %v445, 0.0
    %v485 = vmax.f32 %v447, 0.0
    %v486 = vmax.f32 %v450, 0.0
    %v487 = vmax.f32 %v452, 0.0
    %v488 = vmax.f32 %v455, 0.0
    %v489 = vmax.f32 %v457, 0.0
    %v490 = vmax.f32 %v460, 0.0
    %v491 = vmax.f32 %v462, 0.0
    %v492 = vmax.f32 %v465, 0.0
    %v493 = vmax.f32 %v467, 0.0
    %v494 = vmax.f32 %v470, 0.0
    %v495 = vmax.f32 %v472, 0.0
    %v496 = vmax.f32 %v475, 0.0
    %v497 = vmax.f32 %v477, 0.0
    %v498 = vmax.f32 %v480, 0.0
    %v499 = vmax.f32 %v482, 0.0
    %v500 = vpack.c.bf16 %v485, %v484
    %v501 = vpack.c.bf16 %v487, %v486
    %v502 = vpack.c.bf16 %v489, %v488
    %v503 = vpack.c.bf16 %v491, %v490
    %v504 = vpack.c.bf16 %v493, %v492
    %v505 = vpack.c.bf16 %v495, %v494
    %v506 = vpack.c.bf16 %v497, %v496
    %v507 = vpack.c.bf16 %v499, %v498
    %s508 = scalar_lea.vmem [#allocation7], 256
    %v509 = vld [vmem:[%s508] sm:$0xff]
    %v510 = vld [vmem:[%s508 + $0x8] sm:$0xff]
    %v511 = vld [vmem:[%s508 + $0x10] sm:$0xff]
    %v512 = vld [vmem:[%s508 + $0x18] sm:$0xff]
    %v513 = vld [vmem:[%s508 + $0x20] sm:$0xff]
    %v514 = vld [vmem:[%s508 + $0x28] sm:$0xff]
    %v515 = vld [vmem:[%s508 + $0x30] sm:$0xff]
    %v516 = vld [vmem:[%s508 + $0x38] sm:$0xff]
    %v517 = vld [vmem:[%s508 + $0x40] sm:$0xff]
    %v518 = vld [vmem:[%s508 + $0x48] sm:$0xff]
    %v519 = vld [vmem:[%s508 + $0x50] sm:$0xff]
    %v520 = vld [vmem:[%s508 + $0x58] sm:$0xff]
    %v521 = vld [vmem:[%s508 + $0x60] sm:$0xff]
    %v522 = vld [vmem:[%s508 + $0x68] sm:$0xff]
    %v523 = vld [vmem:[%s508 + $0x70] sm:$0xff]
    %v524 = vld [vmem:[%s508 + $0x78] sm:$0xff]
    %v525 = vpack.c.bf16 %v510, %v509
    %v526 = vpack.c.bf16 %v512, %v511
    %v527 = vpack.c.bf16 %v514, %v513
    %v528 = vpack.c.bf16 %v516, %v515
    %v529 = vpack.c.bf16 %v518, %v517
    %v530 = vpack.c.bf16 %v520, %v519
    %v531 = vpack.c.bf16 %v522, %v521
    %v532 = vpack.c.bf16 %v524, %v523
    %533 = vmatpush.bf16.msra.mxu0 %v532
    %534 = vmatpush.bf16.msra.mxu0 %v531
    %535 = vmatpush.bf16.msra.mxu0 %v530
    %536 = vmatpush.bf16.msra.mxu0 %v529
    %537 = vmatpush.bf16.msra.mxu0 %v528
    %538 = vmatpush.bf16.msra.mxu0 %v527
    %539 = vmatpush.bf16.msra.mxu0 %v526
    %540 = vmatpush.bf16.msra.mxu0 %v525
    %541 = vmatmul.bf16.gmra.mxu0 %v500
    %v542 = vpop.f32.mrf.mxu0
    %v543 = vadd.f32 0.0, %v542
    %v544 = vpop.f32.mrf.mxu0
    %v545 = vadd.f32 0.0, %v544
    %546 = vmatmul.bf16.gmra.mxu0 %v501
    %v547 = vpop.f32.mrf.mxu0
    %v548 = vadd.f32 0.0, %v547
    %v549 = vpop.f32.mrf.mxu0
    %v550 = vadd.f32 0.0, %v549
    %551 = vmatmul.bf16.gmra.mxu0 %v502
    %v552 = vpop.f32.mrf.mxu0
    %v553 = vadd.f32 0.0, %v552
    %v554 = vpop.f32.mrf.mxu0
    %v555 = vadd.f32 0.0, %v554
    %556 = vmatmul.bf16.gmra.mxu0 %v503
    %v557 = vpop.f32.mrf.mxu0
    %v558 = vadd.f32 0.0, %v557
    %v559 = vpop.f32.mrf.mxu0
    %v560 = vadd.f32 0.0, %v559
    %561 = vmatmul.bf16.gmra.mxu0 %v504
    %v562 = vpop.f32.mrf.mxu0
    %v563 = vadd.f32 0.0, %v562
    %v564 = vpop.f32.mrf.mxu0
    %v565 = vadd.f32 0.0, %v564
    %566 = vmatmul.bf16.gmra.mxu0 %v505
    %v567 = vpop.f32.mrf.mxu0
    %v568 = vadd.f32 0.0, %v567
    %v569 = vpop.f32.mrf.mxu0
    %v570 = vadd.f32 0.0, %v569
    %571 = vmatmul.bf16.gmra.mxu0 %v506
    %v572 = vpop.f32.mrf.mxu0
    %v573 = vadd.f32 0.0, %v572
    %v574 = vpop.f32.mrf.mxu0
    %v575 = vadd.f32 0.0, %v574
    %576 = vmatmul.bf16.gmra.mxu0 %v507
    %v577 = vpop.f32.mrf.mxu0
    %v578 = vadd.f32 0.0, %v577
    %v579 = vpop.f32.mrf.mxu0
    %v580 = vadd.f32 0.0, %v579
    %581 = vdwg.mxu0
    %v582 = vpack.c.bf16 %v545, %v543
    %v583 = vpack.c.bf16 %v550, %v548
    %v584 = vpack.c.bf16 %v555, %v553
    %v585 = vpack.c.bf16 %v560, %v558
    %v586 = vpack.c.bf16 %v565, %v563
    %v587 = vpack.c.bf16 %v570, %v568
    %v588 = vpack.c.bf16 %v575, %v573
    %v589 = vpack.c.bf16 %v580, %v578
    %s590 = scalar_lea.vmem [#allocation8], 2
    %v591 = vld [vmem:[%s590] sm:$0x1]
    %v593 = vperm.slane %v591, 0
    %595 = vmatpush.bf16.msra.mxu0 %v589
    %596 = vmatpush.bf16.msra.mxu0 %v588
    %597 = vmatpush.bf16.msra.mxu0 %v587
    %598 = vmatpush.bf16.msra.mxu0 %v586
    %599 = vmatpush.bf16.msra.mxu0 %v585
    %600 = vmatpush.bf16.msra.mxu0 %v584
    %601 = vmatpush.bf16.msra.mxu0 %v583
    %602 = vmatpush.bf16.msra.mxu0 %v582
    %603 = vmatmul.bf16.gmra.mxu0 %v259
    %v604 = vpop.f32.mrf.mxu0
    %v605 = vadd.f32 %v593, %v604
    %v606 = vpop.f32.mrf.mxu0
    %v607 = vadd.f32 %v593, %v606
    %608 = vmatmul.bf16.gmra.mxu0 %v260
    %v609 = vpop.f32.mrf.mxu0
    %v610 = vadd.f32 %v593, %v609
    %v611 = vpop.f32.mrf.mxu0
    %v612 = vadd.f32 %v593, %v611
    %613 = vmatmul.bf16.gmra.mxu0 %v261
    %v614 = vpop.f32.mrf.mxu0
    %v615 = vadd.f32 %v593, %v614
    %v616 = vpop.f32.mrf.mxu0
    %v617 = vadd.f32 %v593, %v616
    %618 = vmatmul.bf16.gmra.mxu0 %v262
    %v619 = vpop.f32.mrf.mxu0
    %v620 = vadd.f32 %v593, %v619
    %v621 = vpop.f32.mrf.mxu0
    %v622 = vadd.f32 %v593, %v621
    %623 = vmatmul.bf16.gmra.mxu0 %v263
    %v624 = vpop.f32.mrf.mxu0
    %v625 = vadd.f32 %v593, %v624
    %v626 = vpop.f32.mrf.mxu0
    %v627 = vadd.f32 %v593, %v626
    %628 = vmatmul.bf16.gmra.mxu0 %v264
    %v629 = vpop.f32.mrf.mxu0
    %v630 = vadd.f32 %v593, %v629
    %v631 = vpop.f32.mrf.mxu0
    %v632 = vadd.f32 %v593, %v631
    %633 = vmatmul.bf16.gmra.mxu0 %v265
    %v634 = vpop.f32.mrf.mxu0
    %v635 = vadd.f32 %v593, %v634
    %v636 = vpop.f32.mrf.mxu0
    %v637 = vadd.f32 %v593, %v636
    %638 = vmatmul.bf16.gmra.mxu0 %v266
    %v639 = vpop.f32.mrf.mxu0
    %v640 = vadd.f32 %v593, %v639
    %v641 = vpop.f32.mrf.mxu0
    %v642 = vadd.f32 %v593, %v641
    %643 = vdwg.mxu0
    %v644 = vld [vmem:[#allocation10] sm:$0xff]
    %v645 = vld [vmem:[#allocation10 + $0x8] sm:$0xff]
    %v646 = vld [vmem:[#allocation10 + $0x10] sm:$0xff]
    %v647 = vld [vmem:[#allocation10 + $0x18] sm:$0xff]
    %v648 = vld [vmem:[#allocation10 + $0x20] sm:$0xff]
    %v649 = vld [vmem:[#allocation10 + $0x28] sm:$0xff]
    %v650 = vld [vmem:[#allocation10 + $0x30] sm:$0xff]
    %v651 = vld [vmem:[#allocation10 + $0x38] sm:$0xff]
    %v652 = vld [vmem:[#allocation10 + $0x40] sm:$0xff]
    %v653 = vld [vmem:[#allocation10 + $0x48] sm:$0xff]
    %v654 = vld [vmem:[#allocation10 + $0x50] sm:$0xff]
    %v655 = vld [vmem:[#allocation10 + $0x58] sm:$0xff]
    %v656 = vld [vmem:[#allocation10 + $0x60] sm:$0xff]
    %v657 = vld [vmem:[#allocation10 + $0x68] sm:$0xff]
    %v658 = vld [vmem:[#allocation10 + $0x70] sm:$0xff]
    %v659 = vld [vmem:[#allocation10 + $0x78] sm:$0xff]
    %v660 = vld [vmem:[%s5] sm:$0x1]
    %v662 = vperm.slane %v660, 0
    %664 = vmatpush.msra.mxu0 %v659
    %665 = vmatpush.msra.mxu0 %v658
    %666 = vmatpush.msra.mxu0 %v657
    %667 = vmatpush.msra.mxu0 %v656
    %668 = vmatpush.msra.mxu0 %v655
    %669 = vmatpush.msra.mxu0 %v654
    %670 = vmatpush.msra.mxu0 %v653
    %671 = vmatpush.msra.mxu0 %v652
    %672 = vmatpush.msra.mxu0 %v651
    %673 = vmatpush.msra.mxu0 %v650
    %674 = vmatpush.msra.mxu0 %v649
    %675 = vmatpush.msra.mxu0 %v648
    %676 = vmatpush.msra.mxu0 %v647
    %677 = vmatpush.msra.mxu0 %v646
    %678 = vmatpush.msra.mxu0 %v645
    %679 = vmatpush.msra.mxu0 %v644
    %680 = vmatmul.f32.gmra.mxu0 %v605
    %v681 = vpop.f32.mrf.mxu0
    %v682 = vadd.f32 %v662, %v681
    %683 = vmatmul.f32.gmra.mxu0 %v607
    %v684 = vpop.f32.mrf.mxu0
    %v685 = vadd.f32 %v662, %v684
    %686 = vmatmul.f32.gmra.mxu0 %v610
    %v687 = vpop.f32.mrf.mxu0
    %v688 = vadd.f32 %v662, %v687
    %689 = vmatmul.f32.gmra.mxu0 %v612
    %v690 = vpop.f32.mrf.mxu0
    %v691 = vadd.f32 %v662, %v690
    %692 = vmatmul.f32.gmra.mxu0 %v615
    %v693 = vpop.f32.mrf.mxu0
    %v694 = vadd.f32 %v662, %v693
    %695 = vmatmul.f32.gmra.mxu0 %v617
    %v696 = vpop.f32.mrf.mxu0
    %v697 = vadd.f32 %v662, %v696
    %698 = vmatmul.f32.gmra.mxu0 %v620
    %v699 = vpop.f32.mrf.mxu0
    %v700 = vadd.f32 %v662, %v699
    %701 = vmatmul.f32.gmra.mxu0 %v622
    %v702 = vpop.f32.mrf.mxu0
    %v703 = vadd.f32 %v662, %v702
    %704 = vmatmul.f32.gmra.mxu0 %v625
    %v705 = vpop.f32.mrf.mxu0
    %v706 = vadd.f32 %v662, %v705
    %707 = vmatmul.f32.gmra.mxu0 %v627
    %v708 = vpop.f32.mrf.mxu0
    %v709 = vadd.f32 %v662, %v708
    %710 = vmatmul.f32.gmra.mxu0 %v630
    %v711 = vpop.f32.mrf.mxu0
    %v712 = vadd.f32 %v662, %v711
    %713 = vmatmul.f32.gmra.mxu0 %v632
    %v714 = vpop.f32.mrf.mxu0
    %v715 = vadd.f32 %v662, %v714
    %716 = vmatmul.f32.gmra.mxu0 %v635
    %v717 = vpop.f32.mrf.mxu0
    %v718 = vadd.f32 %v662, %v717
    %719 = vmatmul.f32.gmra.mxu0 %v637
    %v720 = vpop.f32.mrf.mxu0
    %v721 = vadd.f32 %v662, %v720
    %722 = vmatmul.f32.gmra.mxu0 %v640
    %v723 = vpop.f32.mrf.mxu0
    %v724 = vadd.f32 %v662, %v723
    %725 = vmatmul.f32.gmra.mxu0 %v642
    %v726 = vpop.f32.mrf.mxu0
    %v727 = vadd.f32 %v662, %v726
    %728 = vdwg.mxu0
    %v729 = vmax.f32 %v682, 0.0
    %v730 = vmax.f32 %v685, 0.0
    %v731 = vmax.f32 %v688, 0.0
    %v732 = vmax.f32 %v691, 0.0
    %v733 = vmax.f32 %v694, 0.0
    %v734 = vmax.f32 %v697, 0.0
    %v735 = vmax.f32 %v700, 0.0
    %v736 = vmax.f32 %v703, 0.0
    %v737 = vmax.f32 %v706, 0.0
    %v738 = vmax.f32 %v709, 0.0
    %v739 = vmax.f32 %v712, 0.0
    %v740 = vmax.f32 %v715, 0.0
    %v741 = vmax.f32 %v718, 0.0
    %v742 = vmax.f32 %v721, 0.0
    %v743 = vmax.f32 %v724, 0.0
    %v744 = vmax.f32 %v727, 0.0
    %s745 = scalar_lea.vmem [#allocation10], 128
    %v746 = vld [vmem:[%s745] sm:$0xff]
    %v747 = vld [vmem:[%s745 + $0x8] sm:$0xff]
    %v748 = vld [vmem:[%s745 + $0x10] sm:$0xff]
    %v749 = vld [vmem:[%s745 + $0x18] sm:$0xff]
    %v750 = vld [vmem:[%s745 + $0x20] sm:$0xff]
    %v751 = vld [vmem:[%s745 + $0x28] sm:$0xff]
    %v752 = vld [vmem:[%s745 + $0x30] sm:$0xff]
    %v753 = vld [vmem:[%s745 + $0x38] sm:$0xff]
    %v754 = vld [vmem:[%s745 + $0x40] sm:$0xff]
    %v755 = vld [vmem:[%s745 + $0x48] sm:$0xff]
    %v756 = vld [vmem:[%s745 + $0x50] sm:$0xff]
    %v757 = vld [vmem:[%s745 + $0x58] sm:$0xff]
    %v758 = vld [vmem:[%s745 + $0x60] sm:$0xff]
    %v759 = vld [vmem:[%s745 + $0x68] sm:$0xff]
    %v760 = vld [vmem:[%s745 + $0x70] sm:$0xff]
    %v761 = vld [vmem:[%s745 + $0x78] sm:$0xff]
    %s762 = scalar_lea.vmem %s5, 1
    %v763 = vld [vmem:[%s762] sm:$0x1]
    %v765 = vperm.slane %v763, 0
    %767 = vmatpush.msra.mxu0 %v761
    %768 = vmatpush.msra.mxu0 %v760
    %769 = vmatpush.msra.mxu0 %v759
    %770 = vmatpush.msra.mxu0 %v758
    %771 = vmatpush.msra.mxu0 %v757
    %772 = vmatpush.msra.mxu0 %v756
    %773 = vmatpush.msra.mxu0 %v755
    %774 = vmatpush.msra.mxu0 %v754
    %775 = vmatpush.msra.mxu0 %v753
    %776 = vmatpush.msra.mxu0 %v752
    %777 = vmatpush.msra.mxu0 %v751
    %778 = vmatpush.msra.mxu0 %v750
    %779 = vmatpush.msra.mxu0 %v749
    %780 = vmatpush.msra.mxu0 %v748
    %781 = vmatpush.msra.mxu0 %v747
    %782 = vmatpush.msra.mxu0 %v746
    %783 = vmatmul.f32.gmra.mxu0 %v729
    %v784 = vpop.f32.mrf.mxu0
    %v785 = vadd.f32 %v765, %v784
    %786 = vmatmul.f32.gmra.mxu0 %v730
    %v787 = vpop.f32.mrf.mxu0
    %v788 = vadd.f32 %v765, %v787
    %789 = vmatmul.f32.gmra.mxu0 %v731
    %v790 = vpop.f32.mrf.mxu0
    %v791 = vadd.f32 %v765, %v790
    %792 = vmatmul.f32.gmra.mxu0 %v732
    %v793 = vpop.f32.mrf.mxu0
    %v794 = vadd.f32 %v765, %v793
    %795 = vmatmul.f32.gmra.mxu0 %v733
    %v796 = vpop.f32.mrf.mxu0
    %v797 = vadd.f32 %v765, %v796
    %798 = vmatmul.f32.gmra.mxu0 %v734
    %v799 = vpop.f32.mrf.mxu0
    %v800 = vadd.f32 %v765, %v799
    %801 = vmatmul.f32.gmra.mxu0 %v735
    %v802 = vpop.f32.mrf.mxu0
    %v803 = vadd.f32 %v765, %v802
    %804 = vmatmul.f32.gmra.mxu0 %v736
    %v805 = vpop.f32.mrf.mxu0
    %v806 = vadd.f32 %v765, %v805
    %807 = vmatmul.f32.gmra.mxu0 %v737
    %v808 = vpop.f32.mrf.mxu0
    %v809 = vadd.f32 %v765, %v808
    %810 = vmatmul.f32.gmra.mxu0 %v738
    %v811 = vpop.f32.mrf.mxu0
    %v812 = vadd.f32 %v765, %v811
    %813 = vmatmul.f32.gmra.mxu0 %v739
    %v814 = vpop.f32.mrf.mxu0
    %v815 = vadd.f32 %v765, %v814
    %816 = vmatmul.f32.gmra.mxu0 %v740
    %v817 = vpop.f32.mrf.mxu0
    %v818 = vadd.f32 %v765, %v817
    %819 = vmatmul.f32.gmra.mxu0 %v741
    %v820 = vpop.f32.mrf.mxu0
    %v821 = vadd.f32 %v765, %v820
    %822 = vmatmul.f32.gmra.mxu0 %v742
    %v823 = vpop.f32.mrf.mxu0
    %v824 = vadd.f32 %v765, %v823
    %825 = vmatmul.f32.gmra.mxu0 %v743
    %v826 = vpop.f32.mrf.mxu0
    %v827 = vadd.f32 %v765, %v826
    %828 = vmatmul.f32.gmra.mxu0 %v744
    %v829 = vpop.f32.mrf.mxu0
    %v830 = vadd.f32 %v765, %v829
    %831 = vdwg.mxu0
    %v832 = vmax.f32 %v785, 0.0
    %v833 = vmax.f32 %v788, 0.0
    %v834 = vmax.f32 %v791, 0.0
    %v835 = vmax.f32 %v794, 0.0
    %v836 = vmax.f32 %v797, 0.0
    %v837 = vmax.f32 %v800, 0.0
    %v838 = vmax.f32 %v803, 0.0
    %v839 = vmax.f32 %v806, 0.0
    %v840 = vmax.f32 %v809, 0.0
    %v841 = vmax.f32 %v812, 0.0
    %v842 = vmax.f32 %v815, 0.0
    %v843 = vmax.f32 %v818, 0.0
    %v844 = vmax.f32 %v821, 0.0
    %v845 = vmax.f32 %v824, 0.0
    %v846 = vmax.f32 %v827, 0.0
    %v847 = vmax.f32 %v830, 0.0
    %s848 = scalar_lea.vmem [#allocation10], 256
    %v849 = vld [vmem:[%s848] sm:$0xff]
    %v850 = vld [vmem:[%s848 + $0x8] sm:$0xff]
    %v851 = vld [vmem:[%s848 + $0x10] sm:$0xff]
    %v852 = vld [vmem:[%s848 + $0x18] sm:$0xff]
    %v853 = vld [vmem:[%s848 + $0x20] sm:$0xff]
    %v854 = vld [vmem:[%s848 + $0x28] sm:$0xff]
    %v855 = vld [vmem:[%s848 + $0x30] sm:$0xff]
    %v856 = vld [vmem:[%s848 + $0x38] sm:$0xff]
    %v857 = vld [vmem:[%s848 + $0x40] sm:$0xff]
    %v858 = vld [vmem:[%s848 + $0x48] sm:$0xff]
    %v859 = vld [vmem:[%s848 + $0x50] sm:$0xff]
    %v860 = vld [vmem:[%s848 + $0x58] sm:$0xff]
    %v861 = vld [vmem:[%s848 + $0x60] sm:$0xff]
    %v862 = vld [vmem:[%s848 + $0x68] sm:$0xff]
    %v863 = vld [vmem:[%s848 + $0x70] sm:$0xff]
    %v864 = vld [vmem:[%s848 + $0x78] sm:$0xff]
    %s865 = scalar_lea.vmem %s5, 2
    %v866 = vld [vmem:[%s865] sm:$0x1]
    %v868 = vperm.slane %v866, 0
    %870 = vmatpush.msra.mxu0 %v864
    %871 = vmatpush.msra.mxu0 %v863
    %872 = vmatpush.msra.mxu0 %v862
    %873 = vmatpush.msra.mxu0 %v861
    %874 = vmatpush.msra.mxu0 %v860
    %875 = vmatpush.msra.mxu0 %v859
    %876 = vmatpush.msra.mxu0 %v858
    %877 = vmatpush.msra.mxu0 %v857
    %878 = vmatpush.msra.mxu0 %v856
    %879 = vmatpush.msra.mxu0 %v855
    %880 = vmatpush.msra.mxu0 %v854
    %881 = vmatpush.msra.mxu0 %v853
    %882 = vmatpush.msra.mxu0 %v852
    %883 = vmatpush.msra.mxu0 %v851
    %884 = vmatpush.msra.mxu0 %v850
    %885 = vmatpush.msra.mxu0 %v849
    %886 = vmatmul.f32.gmra.mxu0 %v832
    %v887 = vpop.f32.mrf.mxu0
    %v888 = vadd.f32 %v868, %v887
    %889 = vmatmul.f32.gmra.mxu0 %v833
    %v890 = vpop.f32.mrf.mxu0
    %v891 = vadd.f32 %v868, %v890
    %892 = vmatmul.f32.gmra.mxu0 %v834
    %v893 = vpop.f32.mrf.mxu0
    %v894 = vadd.f32 %v868, %v893
    %895 = vmatmul.f32.gmra.mxu0 %v835
    %v896 = vpop.f32.mrf.mxu0
    %v897 = vadd.f32 %v868, %v896
    %898 = vmatmul.f32.gmra.mxu0 %v836
    %v899 = vpop.f32.mrf.mxu0
    %v900 = vadd.f32 %v868, %v899
    %901 = vmatmul.f32.gmra.mxu0 %v837
    %v902 = vpop.f32.mrf.mxu0
    %v903 = vadd.f32 %v868, %v902
    %904 = vmatmul.f32.gmra.mxu0 %v838
    %v905 = vpop.f32.mrf.mxu0
    %v906 = vadd.f32 %v868, %v905
    %907 = vmatmul.f32.gmra.mxu0 %v839
    %v908 = vpop.f32.mrf.mxu0
    %v909 = vadd.f32 %v868, %v908
    %910 = vmatmul.f32.gmra.mxu0 %v840
    %v911 = vpop.f32.mrf.mxu0
    %v912 = vadd.f32 %v868, %v911
    %913 = vmatmul.f32.gmra.mxu0 %v841
    %v914 = vpop.f32.mrf.mxu0
    %v915 = vadd.f32 %v868, %v914
    %916 = vmatmul.f32.gmra.mxu0 %v842
    %v917 = vpop.f32.mrf.mxu0
    %v918 = vadd.f32 %v868, %v917
    %919 = vmatmul.f32.gmra.mxu0 %v843
    %v920 = vpop.f32.mrf.mxu0
    %v921 = vadd.f32 %v868, %v920
    %922 = vmatmul.f32.gmra.mxu0 %v844
    %v923 = vpop.f32.mrf.mxu0
    %v924 = vadd.f32 %v868, %v923
    %925 = vmatmul.f32.gmra.mxu0 %v845
    %v926 = vpop.f32.mrf.mxu0
    %v927 = vadd.f32 %v868, %v926
    %928 = vmatmul.f32.gmra.mxu0 %v846
    %v929 = vpop.f32.mrf.mxu0
    %v930 = vadd.f32 %v868, %v929
    %931 = vmatmul.f32.gmra.mxu0 %v847
    %v932 = vpop.f32.mrf.mxu0
    %v933 = vadd.f32 %v868, %v932
    %934 = vdwg.mxu0
    %935 = vst [vmem:[#allocation11] sm:$0xff] %v888
    %936 = vst [vmem:[#allocation11 + $0x8] sm:$0xff] %v891
    %937 = vst [vmem:[#allocation11 + $0x10] sm:$0xff] %v894
    %938 = vst [vmem:[#allocation11 + $0x18] sm:$0xff] %v897
    %939 = vst [vmem:[#allocation11 + $0x20] sm:$0xff] %v900
    %940 = vst [vmem:[#allocation11 + $0x28] sm:$0xff] %v903
    %941 = vst [vmem:[#allocation11 + $0x30] sm:$0xff] %v906
    %942 = vst [vmem:[#allocation11 + $0x38] sm:$0xff] %v909
    %943 = vst [vmem:[#allocation11 + $0x40] sm:$0xff] %v912
    %944 = vst [vmem:[#allocation11 + $0x48] sm:$0xff] %v915
    %945 = vst [vmem:[#allocation11 + $0x50] sm:$0xff] %v918
    %946 = vst [vmem:[#allocation11 + $0x58] sm:$0xff] %v921
    %947 = vst [vmem:[#allocation11 + $0x60] sm:$0xff] %v924
    %948 = vst [vmem:[#allocation11 + $0x68] sm:$0xff] %v927
    %949 = vst [vmem:[#allocation11 + $0x70] sm:$0xff] %v930
    %950 = vst [vmem:[#allocation11 + $0x78] sm:$0xff] %v933
    // Predicated region
    $region46: #{tpu_custom_call.1} parent=1 // pred_check
      _
    $region47: #{tpu_custom_call.1} parent=1 // pred_check_branch
      %952 = sbr.rel (0) target = $region49
    $region48: #{tpu_custom_call.1} parent=1 // pred_region
      %954 = vsyncadd [#allocation4], 0
      %s955 = sshll.u32 [#allocation11], 4
      %s956 = int_to_ptr.vmem [resolvable:$true] %s955
      %s957 = sshll.u32 %s6, 4
      %s958 = int_to_ptr.hbm [resolvable:$true] %s957
      %963 = dma.vmem_to_hbm [thread:$0]  %s956, 2048, %s958, [#allocation4], 128, 128, 8
    $region49: #{tpu_custom_call.1} parent=1 // pred_fallthru
      _
    // Predicated region
    $region50: #{tpu_custom_call.1} parent=1 // pred_check
      _
    $region51: #{tpu_custom_call.1} parent=1 // pred_check_branch
      %965 = sbr.rel (0) target = $region53
    $region52: #{tpu_custom_call.1} parent=1 // pred_region
      %967 = dma.done [#allocation4], 2048
    $region53: #{tpu_custom_call.1} parent=1 // pred_fallthru
      _
    %968 = vsyncpa [#allocation3], 1
    %969 = vsyncpa [#allocation6], 1
    %970 = vsyncpa [#allocation9], 1
    %971 = vsyncpa [#allocation4], 1

</llo_original>
